<compile_context>
chip_gen: v5e
topology: v5e:2x2
jax: 0.10.0
libtpu: 0.0.40
codegen_flags: <defaults>
</compile_context>

<pallas_src>
import jax
import jax.numpy as jnp
from jax.experimental import pallas as pl
from jax.experimental.pallas import tpu as pltpu


def _self_attention_kernel(x_ref, w_ref, out_ref, wts_ref):
    # x_ref  : (BB, T, H) batch tile      w_ref  : (1, H) fc weight (lane-dense row)
    # out_ref: (BB, H) pooled states      wts_ref: (BB, T) softmax attention weights
    h = x_ref.shape[-1]
    # Single upcast; a no-op for f32 inputs.  (For bf16 inputs on v6e/v7x the
    # multiplies could stay in bf16 with f32 accumulation to halve the
    # compute-side VMEM footprint; v5e has no bf16 VALU so it needs the cast.)
    x = x_ref[...].astype(jnp.float32)
    w = w_ref[...].reshape(1, 1, h)                       # broadcast over (BB, T)

    # energy = fc(x): VPU multiply + lane reduce over H.  Squeezed (BB, T) layout
    # keeps T on lanes so all softmax intermediates below are lane-dense.
    # The fc bias is intentionally omitted -- it cancels exactly in the softmax.
    energy = jnp.sum(x * w, axis=-1)                      # (BB, T)

    # Numerically stable softmax over the sequence axis; exact divide (the
    # denominator has only BB values -- an approximate reciprocal buys nothing
    # here and its ~1e-3 relative error is what broke the previous version).
    m = jnp.max(energy, axis=-1, keepdims=True)           # (BB, 1)
    p = jnp.exp(energy - m)                               # (BB, T)
    s = jnp.sum(p, axis=-1, keepdims=True)                # (BB, 1)
    weights = p / s                                       # (BB, T)
    wts_ref[...] = weights.astype(wts_ref.dtype)          # lane-dense store

    # pooled = sum_t weights_t * x_t: broadcast multiply + sublane reduce.
    pooled = jnp.sum(x * jnp.expand_dims(weights, -1), axis=1)   # (BB, H)
    out_ref[...] = pooled.astype(out_ref.dtype)


def _choose_block_b(B, T, H, itemsize):
    """Pick the per-step batch block (sublane-aligned) for the mem-bound kernel."""
    row_in = T * H * itemsize           # one batch row of the input tile
    row_f32 = T * H * 4                 # one batch row of an f32 temporary
    if B <= 8:
        return B                        # tiny batch: single full-extent block
    # Live VMEM per batch row: double-buffered input tile + ~3 tile-sized f32
    # temporaries (f32 copy of x, x*w product, x*weights product).  Keep the
    # total well under the 48 MiB scoped-VMEM limit requested below.
    vmem_budget = 40 * 1024 * 1024
    bb_cap = max(8, (vmem_budget // (2 * row_in + 3 * row_f32)) // 8 * 8)
    # TODO(synk): add a T-tiled online-softmax path for rows where T*H alone is
    # many MiB; here bb simply clamps at 8 and relies on the VMEM limit.
    # Target ~6-8 MiB of raw input per grid step so the ~0.35 us fixed per-step
    # cost amortizes to >=90% of the HBM roofline.
    bb_target = max(8, ((7 * 1024 * 1024) // row_in) // 8 * 8)
    # Prefer several grid steps: overlaps input DMA / compute / writeback and
    # lets the "parallel" batch axis be sharded across v7x's two TensorCores.
    min_steps = 4 if B >= 32 else 2
    bb_split = max(8, (B // min_steps) // 8 * 8)
    return min(bb_cap, bb_target, bb_split)


def self_attention(encode_output, fc_weight, fc_bias=None, block_b=None):
    """encode_output: (B, T, H); fc_weight: (1, H) (PyTorch nn.Linear(H, 1) layout).

    fc_bias is accepted for API parity but unused: a constant added to every
    pre-softmax energy cancels exactly in softmax, so neither output changes.
    """
    B, T, H = encode_output.shape
    itemsize = jnp.dtype(encode_output.dtype).itemsize

    if block_b is None:
        bb = _choose_block_b(B, T, H, itemsize)
    else:
        bb = max(1, int(block_b))
        if bb >= B:
            bb = B                          # single full-extent block
        else:
            bb = max(8, (bb // 8) * 8)      # keep tiled blocks sublane-aligned

    steps = -(-B // bb)
    b_padded = steps * bb
    x = encode_output
    if b_padded != B:
        x = jnp.pad(x, ((0, b_padded - B), (0, 0), (0, 0)))

    w_row = jnp.asarray(fc_weight, jnp.float32).reshape(1, H)   # lane-dense (1, H)
    del fc_bias   # cancels in softmax (see docstring)

    outputs, weights = pl.pallas_call(
        _self_attention_kernel,
        out_shape=(
            jax.ShapeDtypeStruct((b_padded, H), encode_output.dtype),
            jax.ShapeDtypeStruct((b_padded, T), jnp.float32),
        ),
        grid=(steps,),
        in_specs=[
            pl.BlockSpec((bb, T, H), lambda bi: (bi, 0, 0)),    # batch tile
            pl.BlockSpec((1, H), lambda bi: (0, 0)),            # shared fc weight
        ],
        out_specs=(
            pl.BlockSpec((bb, H), lambda bi: (bi, 0)),          # pooled states
            pl.BlockSpec((bb, T), lambda bi: (bi, 0)),          # attention weights
        ),
        compiler_params=pltpu.CompilerParams(
            dimension_semantics=("parallel",),
            # 48 MiB scoped VMEM: backs the ~7 MiB double-buffered tiles plus the
            # f32 temporaries, and stays inside v7x's 64 MiB physical VMEM
            # (v5e/v6e have 128 MiB, so this is safe on every generation).
            vmem_limit_bytes=48 * 1024 * 1024,
        ),
    )(x, w_row)

    if b_padded != B:
        outputs = outputs[:B]
        weights = weights[:B]
    return outputs, weights


def _reference(encode_output, fc_weight, fc_bias):
    # Pure-JAX mirror of the PyTorch forward (bias included here; it cancels in
    # softmax, so the kernel that drops it must still match exactly).
    energy = jnp.einsum("bth,oh->bto", encode_output, fc_weight) + fc_bias   # (B,T,1)
    weights = jax.nn.softmax(energy[..., 0], axis=1)                          # (B,T)
    outputs = jnp.sum(encode_output * weights[..., None], axis=1)             # (B,H)
    return outputs, weights


if __name__ == "__main__":
    key = jax.random.PRNGKey(0)
    kx, kw, kb, kx2 = jax.random.split(key, 4)

    # Case 1: small shapes implied by the module (batch=2, seq=8, hidden=32).
    B, T, H = 2, 8, 32
    encode_output = jax.random.normal(kx, (B, T, H), dtype=jnp.float32)
    fc_weight = jax.random.normal(kw, (1, H), dtype=jnp.float32) * (H ** -0.5)
    fc_bias = jax.random.normal(kb, (1,), dtype=jnp.float32) * 0.1

    outputs, weights = self_attention(encode_output, fc_weight, fc_bias)
    jax.block_until_ready((outputs, weights))
    ref_out, ref_w = _reference(encode_output, fc_weight, fc_bias)
    assert jnp.allclose(outputs, ref_out, atol=2e-3, rtol=2e-3), "outputs mismatch (case 1)"
    assert jnp.allclose(weights, ref_w, atol=2e-3, rtol=2e-3), "weights mismatch (case 1)"

    # Case 2: multi-step batch grid + padding path (B=20, bb=8 -> grid=3),
    # i.e. the configuration that previously failed with the approx reciprocal.
    B2 = 20
    encode_output2 = jax.random.normal(kx2, (B2, T, H), dtype=jnp.float32)
    outputs2, weights2 = self_attention(encode_output2, fc_weight, fc_bias, block_b=8)
    jax.block_until_ready((outputs2, weights2))
    ref_out2, ref_w2 = _reference(encode_output2, fc_weight, fc_bias)
    assert jnp.allclose(outputs2, ref_out2, atol=2e-3, rtol=2e-3), "outputs mismatch (case 2)"
    assert jnp.allclose(weights2, ref_w2, atol=2e-3, rtol=2e-3), "weights mismatch (case 2)"

    print("KERNEL_OK")
</pallas_src>

<mosaic_0001>
module attributes {stable_mosaic.version = 11 : i64} {
  func.func @_self_attention_kernel(%arg0: i32, %arg1: memref<2x8x32xf32, #tpu.memory_space<vmem>>, %arg2: memref<1x32xf32, #tpu.memory_space<vmem>>, %arg3: memref<2x32xf32, #tpu.memory_space<vmem>>, %arg4: memref<2x8xf32, #tpu.memory_space<vmem>>) attributes {dimension_semantics = [#tpu.dimension_semantics<parallel>], iteration_bounds = array<i64: 1>, scalar_prefetch = 0 : i64, scratch_operands = 0 : i64, tpu.core_type = #tpu.core_type<tc>, window_params = [{transform_indices = @transform_0, window_bounds = array<i64: 2, 8, 32>}, {pipeline_mode = #tpu.pipeline_mode<synchronous>, transform_indices = @transform_1, window_bounds = array<i64: 1, 32>}, {transform_indices = @transform_2, window_bounds = array<i64: 2, 32>}, {transform_indices = @transform_3, window_bounds = array<i64: 2, 8>}]} {
    %c0 = arith.constant 0 : index
    %c0_0 = arith.constant 0 : index
    %c0_1 = arith.constant 0 : index
    %0 = vector.load %arg1[%c0, %c0_0, %c0_1] : memref<2x8x32xf32, #tpu.memory_space<vmem>>, vector<2x8x32xf32>
    %c0_2 = arith.constant 0 : index
    %c0_3 = arith.constant 0 : index
    %1 = vector.load %arg2[%c0_2, %c0_3] : memref<1x32xf32, #tpu.memory_space<vmem>>, vector<1x32xf32>
    %2 = vector.shape_cast %1 : vector<1x32xf32> to vector<1x1x32xf32>
    %3 = vector.broadcast %2 : vector<1x1x32xf32> to vector<2x8x32xf32>
    %4 = arith.mulf %0, %3 : vector<2x8x32xf32>
    %cst = arith.constant dense<0.000000e+00> : vector<2x8xf32>
    %5 = vector.multi_reduction <add>, %4, %cst [2] : vector<2x8x32xf32> to vector<2x8xf32>
    %cst_4 = arith.constant dense<0xFF800000> : vector<2xf32>
    %6 = vector.multi_reduction <maximumf>, %5, %cst_4 [1] : vector<2x8xf32> to vector<2xf32>
    %7 = vector.shape_cast %6 : vector<2xf32> to vector<2x1xf32>
    %8 = vector.broadcast %7 : vector<2x1xf32> to vector<2x8xf32>
    %9 = arith.subf %5, %8 : vector<2x8xf32>
    %10 = math.exp %9 : vector<2x8xf32>
    %cst_5 = arith.constant dense<0.000000e+00> : vector<2xf32>
    %11 = vector.multi_reduction <add>, %10, %cst_5 [1] : vector<2x8xf32> to vector<2xf32>
    %12 = vector.shape_cast %11 : vector<2xf32> to vector<2x1xf32>
    %13 = vector.broadcast %12 : vector<2x1xf32> to vector<2x8xf32>
    %14 = arith.divf %10, %13 : vector<2x8xf32>
    %c0_6 = arith.constant 0 : index
    %c0_7 = arith.constant 0 : index
    %15 = vector.load %arg4[%c0_6, %c0_7] : memref<2x8xf32, #tpu.memory_space<vmem>>, vector<2x8xf32>
    tpu.vector_store %arg4[%c0_6, %c0_7], %14 {strides = array<i32>} : memref<2x8xf32, #tpu.memory_space<vmem>>, vector<2x8xf32>,
    %16 = vector.shape_cast %14 : vector<2x8xf32> to vector<2x8x1xf32>
    %17 = vector.broadcast %16 : vector<2x8x1xf32> to vector<2x8x32xf32>
    %18 = arith.mulf %0, %17 : vector<2x8x32xf32>
    %cst_8 = arith.constant dense<0.000000e+00> : vector<2x32xf32>
    %19 = vector.multi_reduction <add>, %18, %cst_8 [1] : vector<2x8x32xf32> to vector<2x32xf32>
    %c0_9 = arith.constant 0 : index
    %c0_10 = arith.constant 0 : index
    %20 = vector.load %arg3[%c0_9, %c0_10] : memref<2x32xf32, #tpu.memory_space<vmem>>, vector<2x32xf32>
    tpu.vector_store %arg3[%c0_9, %c0_10], %19 {strides = array<i32>} : memref<2x32xf32, #tpu.memory_space<vmem>>, vector<2x32xf32>,
    return
  }
  func.func @transform_0(%arg0: i32) -> (i32, i32, i32) {
    %c0_i32 = arith.constant 0 : i32
    %c0_i32_0 = arith.constant 0 : i32
    %c0_i32_1 = arith.constant 0 : i32
    return %arg0, %c0_i32, %c0_i32_0 : i32, i32, i32
  }
  func.func @transform_1(%arg0: i32) -> (i32, i32) {
    %c0_i32 = arith.constant 0 : i32
    %c0_i32_0 = arith.constant 0 : i32
    %c0_i32_1 = arith.constant 0 : i32
    return %c0_i32, %c0_i32_0 : i32, i32
  }
  func.func @transform_2(%arg0: i32) -> (i32, i32) {
    %c0_i32 = arith.constant 0 : i32
    %c0_i32_0 = arith.constant 0 : i32
    return %arg0, %c0_i32 : i32, i32
  }
  func.func @transform_3(%arg0: i32) -> (i32, i32) {
    %c0_i32 = arith.constant 0 : i32
    %c0_i32_0 = arith.constant 0 : i32
    return %arg0, %c0_i32 : i32, i32
  }
}

</mosaic_0001>

<llo_original>
// kernel: tpu_custom_call.1
$region0: #{tpu_custom_call.1}
  #allocation0 [shape = 'u32[]', space=smem, size = 0x4, offset = 0x4, fixed_abs, tag = 'smem constant byte address 0x4 - core index']
  #allocation1 [shape = 'u32[72,128]{1,0:T(1,128)}', space=vmem, size = 0x9000, scoped, tag = 'internal scratch']
  %s0 = inlined_call_operand.hbm [shape: f32[2,8,32], index: 0, kind: input, shape index: {}]
  %s1 = inlined_call_operand.hbm [shape: f32[1,32], index: 1, kind: input, shape index: {}]
  %s2 = inlined_call_operand.hbm [shape: f32[2,32], index: 2, kind: output, shape index: {0}]
  %s3 = inlined_call_operand.hbm [shape: f32[2,8], index: 3, kind: output, shape index: {1}]
  %4 = xla_tuple %s2, %s3
  %s5 = sld [smem:[#allocation0]]
  $region34: #{tpu_custom_call.1} parent=0
    _
  %s7 = ssub.s32 1, %s5
  %s8 = scalar_select 0, %s7, %s5
  $region1: #{tpu_custom_call.1} parent=0
    #allocation2 [shape = 'u8[8192]{0}', space=vmem, size = 0x2000, scoped, tag = 'input window, operand 0, single buffered']
    #allocation3 [shape = 's32[1]{0}', space=sflag, size = 0x4, scoped, tag = 'scoped memory for tpu_custom_call.1']
    #allocation4 [shape = 's32[1]{0}', space=sflag, size = 0x4, scoped, tag = 'scoped memory for tpu_custom_call.1']
    #allocation5 [shape = 'u8[512]{0}', space=vmem, size = 0x400, scoped, tag = 'input window, operand 1, single buffered']
    #allocation6 [shape = 's32[1]{0}', space=sflag, size = 0x4, scoped, tag = 'scoped memory for tpu_custom_call.1']
    #allocation7 [shape = 'u8[1024]{0}', space=vmem, size = 0x400, scoped, tag = 'output window, operand 0, single buffered']
    #allocation8 [shape = 'u8[1024]{0}', space=vmem, size = 0x400, scoped, tag = 'output window, operand 1, single buffered']
    #allocation9 [shape = 's32[1]{0}', space=sflag, size = 0x4, scoped, tag = 'scoped memory for tpu_custom_call.1']
    %9 = vsyncpa [#allocation3], 0
    %10 = vsyncpa [#allocation6], 0
    %11 = vsyncpa [#allocation4], 0
    %12 = vsyncpa [#allocation9], 0
    // Predicated region
    $region2: #{tpu_custom_call.1} parent=1 // pred_check
      _
    $region3: #{tpu_custom_call.1} parent=1 // pred_check_branch
      %14 = sbr.rel (0) target = $region5
    $region4: #{tpu_custom_call.1} parent=1 // pred_region
      %16 = vsyncadd [#allocation3], 0
      %s17 = sshll.u32 %s0, 4
      %s18 = int_to_ptr.hbm [resolvable:$true] %s17
      %s19 = sshll.u32 [#allocation2], 4
      %s20 = int_to_ptr.vmem [resolvable:$true] %s19
      %25 = dma.hbm_to_vmem [thread:$0]  %s18, 256, %s20, [#allocation3], 128, 128, 8
    $region5: #{tpu_custom_call.1} parent=1 // pred_fallthru
      _
    // Predicated region
    $region6: #{tpu_custom_call.1} parent=1 // pred_check
      _
    $region7: #{tpu_custom_call.1} parent=1 // pred_check_branch
      %27 = sbr.rel (0) target = $region9
    $region8: #{tpu_custom_call.1} parent=1 // pred_region
      %29 = vsyncadd [#allocation6], 0
      %s31 = sshll.u32 %s1, 4
      %s32 = int_to_ptr.hbm [resolvable:$true] %s31
      %s33 = sshll.u32 [#allocation5], 4
      %s34 = int_to_ptr.vmem [resolvable:$true] %s33
      %36 = dma.hbm_to_vmem [thread:$0]  %s32, 16, %s34, [#allocation6]
    $region9: #{tpu_custom_call.1} parent=1 // pred_fallthru
      _
    // Predicated region
    $region10: #{tpu_custom_call.1} parent=1 // pred_check
      _
    $region11: #{tpu_custom_call.1} parent=1 // pred_check_branch
      %38 = sbr.rel (0) target = $region13
    $region12: #{tpu_custom_call.1} parent=1 // pred_region
      %40 = dma.done [#allocation3], 256
    $region13: #{tpu_custom_call.1} parent=1 // pred_fallthru
      _
    // Predicated region
    $region14: #{tpu_custom_call.1} parent=1 // pred_check
      _
    $region15: #{tpu_custom_call.1} parent=1 // pred_check_branch
      %42 = sbr.rel (0) target = $region17
    $region16: #{tpu_custom_call.1} parent=1 // pred_region
      %44 = dma.done [#allocation6], 16
    $region17: #{tpu_custom_call.1} parent=1 // pred_fallthru
      _
    %v45 = vld [vmem:[#allocation2] sm:$0xff]
    %v46 = vld [vmem:[#allocation2 + $0x8] sm:$0xff]
    %v47 = vld [vmem:[#allocation5] sm:$0x1]
    %v49 = vperm.slane %v47, 0
    %v51 = vmul.f32 %v45, %v49
    %v52 = vmul.f32 %v46, %v49
    %vm53 = vcmask 261120
    %v54 = vsel %vm53, %v51, 0.0
    %55 = vadd.xlane.f32.xlu0 %v54
    %v56 = vpop.xlane.xlu0 %55
    %v57 = vsel %vm53, %v52, 0.0
    %58 = vadd.xlane.f32.xlu0 %v57
    %v59 = vpop.xlane.xlu0 %58
    %v62 = vlaneseq
    %v63 = vand.u32 %v62, 127
    %v64 = vperm.slane %v56, %v63
    %v65 = vperm.slane %v59, %v63
    %vm66 = vcmask 1041409
    %v67 = vsel %vm66, %v65, %v64
    %vm69 = vcmask 58368
    %v70 = vsel %vm69, %v67, -inf
    %71 = vmax.xlane.f32.xlu0 %v70
    %v72 = vpop.xlane.xlu0 %71
    %v74 = vperm.slane %v72, 0
    %v75 = vperm.slane %v72, 1
    %v78 = vsub.f32 %v56, %v74
    %v79 = vsub.f32 %v59, %v75
    %v80 = vmul.f32 %v78, 1.442695
    %v81 = vpow.pop %v80
    %v82 = vmul.f32 %v79, 1.442695
    %v83 = vpow.pop %v82
    %86 = vset.pattern.permute.xlu0 0
    %87 = vperm.xlu0 %86, %v81
    %v88 = vpop.permute.xlu0 %87
    %89 = vset.pattern.permute.xlu0 0
    %90 = vperm.xlu0 %89, %v83
    %v91 = vpop.permute.xlu0 %90
    %v92 = vperm.slane %v88, %v63
    %v93 = vperm.slane %v91, %v63
    %v94 = vsel %vm66, %v93, %v92
    %v96 = vsel %vm69, %v94, 0.0
    %97 = vadd.xlane.f32.xlu0 %v96
    %v98 = vpop.xlane.xlu0 %97
    %v100 = vperm.slane %v98, 0
    %v101 = vperm.slane %v98, 1
    %v104 = vrcp.pop %v100
    %v105 = vmul.f32 %v100, %v104
    %v106 = vsub.f32 1.0, %v105
    %v107 = vmul.f32 %v104, %v106
    %v108 = vadd.f32 %v104, %v107
    %vm109 = vweird.f32 %v100
    %vm110 = vweird.f32 %v104
    %vm111 = vmor %vm109, %vm110
    %v112 = vsel %vm111, %v104, %v108
    %v113 = vand.u32 2147483647, %v100
    %vm114 = vcmp.eq.f32.partialorder %v113, 8.507059e+37
    %v115 = vand.u32 %v100, 2147483648
    %v116 = vor.u32 1.1754944e-38, %v115
    %v117 = vsel %vm114, %v116, %v112
    %v118 = vmul.f32 %v81, %v117
    %v119 = vrcp.pop %v101
    %v120 = vmul.f32 %v101, %v119
    %v121 = vsub.f32 1.0, %v120
    %v122 = vmul.f32 %v119, %v121
    %v123 = vadd.f32 %v119, %v122
    %vm124 = vweird.f32 %v101
    %vm125 = vweird.f32 %v119
    %vm126 = vmor %vm124, %vm125
    %v127 = vsel %vm126, %v119, %v123
    %v128 = vand.u32 2147483647, %v101
    %vm129 = vcmp.eq.f32.partialorder %v128, 8.507059e+37
    %v130 = vand.u32 %v101, 2147483648
    %v131 = vor.u32 1.1754944e-38, %v130
    %v132 = vsel %vm129, %v131, %v127
    %v133 = vmul.f32 %v83, %v132
    %136 = vset.pattern.permute.xlu0 0
    %137 = vperm.xlu0 %136, %v118
    %v138 = vpop.permute.xlu0 %137
    %139 = vset.pattern.permute.xlu0 0
    %140 = vperm.xlu0 %139, %v133
    %v141 = vpop.permute.xlu0 %140
    %v142 = vperm.slane %v138, %v63
    %v143 = vperm.slane %v141, %v63
    %v144 = vsel %vm66, %v143, %v142
    %146 = vst.msk [vmem:[#allocation8] sm:$0x3] %vm69, %v144
    %v149 = vmul.f32 %v45, %v138
    %v150 = vmul.f32 %v46, %v141
    %v151 = vsel %vm53, %v149, 0.0
    %v152 = vrot.slane %v151, 4
    %v153 = vadd.f32 %v151, %v152
    %v154 = vrot.slane %v153, 2
    %v155 = vadd.f32 %v153, %v154
    %v156 = vrot.slane %v155, 1
    %v157 = vadd.f32 %v155, %v156
    %v158 = vsel %vm53, %v150, 0.0
    %v159 = vrot.slane %v158, 4
    %v160 = vadd.f32 %v158, %v159
    %v161 = vrot.slane %v160, 2
    %v162 = vadd.f32 %v160, %v161
    %v163 = vrot.slane %v162, 1
    %v164 = vadd.f32 %v162, %v163
    %v167 = vsel %vm66, %v164, %v157
    %vm169 = vcmask 254976
    %170 = vst.msk [vmem:[#allocation7] sm:$0x3] %vm169, %v167
    // Predicated region
    $region18: #{tpu_custom_call.1} parent=1 // pred_check
      _
    $region19: #{tpu_custom_call.1} parent=1 // pred_check_branch
      %172 = sbr.rel (0) target = $region21
    $region20: #{tpu_custom_call.1} parent=1 // pred_region
      %174 = vsyncadd [#allocation4], 0
      %s176 = sshll.u32 [#allocation7], 4
      %s177 = int_to_ptr.vmem [resolvable:$true] %s176
      %s178 = sshll.u32 %s2, 4
      %s179 = int_to_ptr.hbm [resolvable:$true] %s178
      %181 = dma.vmem_to_hbm [thread:$0]  %s177, 32, %s179, [#allocation4]
    $region21: #{tpu_custom_call.1} parent=1 // pred_fallthru
      _
    // Predicated region
    $region22: #{tpu_custom_call.1} parent=1 // pred_check
      _
    $region23: #{tpu_custom_call.1} parent=1 // pred_check_branch
      %183 = sbr.rel (0) target = $region25
    $region24: #{tpu_custom_call.1} parent=1 // pred_region
      %185 = vsyncadd [#allocation9], 0
      %s187 = sshll.u32 [#allocation8], 4
      %s188 = int_to_ptr.vmem [resolvable:$true] %s187
      %s189 = sshll.u32 %s3, 4
      %s190 = int_to_ptr.hbm [resolvable:$true] %s189
      %192 = dma.vmem_to_hbm [thread:$0]  %s188, 32, %s190, [#allocation9]
    $region25: #{tpu_custom_call.1} parent=1 // pred_fallthru
      _
    // Predicated region
    $region26: #{tpu_custom_call.1} parent=1 // pred_check
      _
    $region27: #{tpu_custom_call.1} parent=1 // pred_check_branch
      %194 = sbr.rel (0) target = $region29
    $region28: #{tpu_custom_call.1} parent=1 // pred_region
      %196 = dma.done [#allocation4], 32
    $region29: #{tpu_custom_call.1} parent=1 // pred_fallthru
      _
    // Predicated region
    $region30: #{tpu_custom_call.1} parent=1 // pred_check
      _
    $region31: #{tpu_custom_call.1} parent=1 // pred_check_branch
      %198 = sbr.rel (0) target = $region33
    $region32: #{tpu_custom_call.1} parent=1 // pred_region
      %200 = dma.done [#allocation9], 32
    $region33: #{tpu_custom_call.1} parent=1 // pred_fallthru
      _
    %201 = vsyncpa [#allocation3], 1
    %202 = vsyncpa [#allocation6], 1
    %203 = vsyncpa [#allocation4], 1
    %204 = vsyncpa [#allocation9], 1

</llo_original>
